<compile_context>
chip_gen: v5e
topology: v5e:2x2
jax: 0.10.0
libtpu: 0.0.40
codegen_flags: <defaults>
</compile_context>

<pallas_src>
import functools

import jax
import jax.numpy as jnp
from jax.experimental import pallas as pl
from jax.experimental.pallas import tpu as pltpu

# ---------------- Config (small shapes consistent with the module) ----------------
HS = 32                 # hidden size ("hs", 768 in the real model)
NUM_HEADS = 2
INTER = 4 * HS
NUM_LAYERS = 2          # vilt.encoder.layer (12 in the real model)
MAX_TEXT_LEN = 8
IMG_SIZE = 32
PATCH = 16
IN_CH = 3
NUM_PATCHES = (IMG_SIZE // PATCH) ** 2     # 4
MAX_IMAGE_LEN = NUM_PATCHES + 1            # image [CLS] + patches = 5
VOCAB = 100
TYPE_VOCAB = 2
CLS_NUM = 2             # task_id == 'hatememes'
CLS_PAD = 128           # lane-dense logits block (sliced to CLS_NUM in JAX)
PROMPT_POSITION = 1
PROMPT_LENGTH = 1       # keeps "1 + 2*prompt_length" mask columns consistent with the
                        # 3 prepended tokens (label_emb, t_prompt, i_prompt)
NUM_PROMPT_TOK = 1 + 2 * PROMPT_LENGTH                      # 3
SEQ_TOT = NUM_PROMPT_TOK + MAX_TEXT_LEN + MAX_IMAGE_LEN     # 16 (8-sublane aligned)
K_RETRIEVED = 3
MISSING_TYPE = 'Text'
MASK_BIAS = -10000.0


# ---------------- small helpers usable inside and outside kernels ----------------
def _ln(x, g, b, eps):
    mu = jnp.mean(x, axis=-1, keepdims=True)
    var = jnp.mean((x - mu) ** 2, axis=-1, keepdims=True)
    return (x - mu) * jax.lax.rsqrt(var + eps) * g + b


def _gelu(x):
    # TODO(synk): PyTorch nn.GELU()/ViLT use exact erf-GELU; tanh approximation is used
    # here for guaranteed Mosaic lowering (deviation ~1e-3).
    return jax.nn.gelu(x, approximate=True)


# ------------------------------- Pallas kernels -------------------------------
def _patch_embed_kernel(p_ref, w_ref, b_ref, o_ref):
    # p_ref: (B*Np, C*P*P); w_ref: (C*P*P, HS); b_ref: (1, HS); o_ref: (B*Np, HS)
    o_ref[...] = (jnp.dot(p_ref[...], w_ref[...], preferred_element_type=jnp.float32)
                  + b_ref[...])


def _ragpt_fused_kernel(
        # inputs
        x_ref,            # (B*S, H)   initial embedding (prompt slots zeroed)
        bias_ref,         # (1, B*S, B*S)  per-layer block-diagonal + token-mask bias
        prompt_ref,       # (B*S, H)   prompt rows slab (zeros on non-prompt rows)
        pmask_ref,        # (B*S, H)   1.0 on prompt rows, 0.0 elsewhere
        lab_ref,          # (B, H)     label_emb per sample (for classifier concat)
        ln1g, ln1b,       # (1, 1, H)  per-layer
        wqkv, bqkv,       # (1, H, 3H), (1, 1, 3H)
        wo, bo,           # (1, H, H), (1, 1, H)
        ln2g, ln2b,       # (1, 1, H)
        w1, b1,           # (1, H, I), (1, 1, I)
        w2, b2,           # (1, I, H), (1, 1, H)
        flng, flnb,       # (1, H)     final vilt.layernorm
        pool_w, pool_b,   # (H, H), (1, H)
        cls_w1, cls_b1,   # (2H, 2H), (1, 2H)
        cls_lng, cls_lnb, # (1, 2H)
        cls_w2, cls_b2,   # (2H, H), (1, H)
        lcls_t,           # (H, CLS_PAD)  label_enhanced^T zero-padded to 128 lanes
        # outputs
        out_ref,          # (B, CLS_PAD)
        # scratch
        acc,              # VMEM (B*S, H) f32 — resident activation across layers
        *, batch, seq, num_heads, prompt_pos):
    l = pl.program_id(0)
    H = acc.shape[-1]
    dh = H // num_heads
    scale = 1.0 / float(dh) ** 0.5

    # ---- load initial embedding into the resident VMEM activation -------------
    @pl.when(l == 0)
    def _():
        acc[...] = x_ref[...]

    # ---- inject [label_emb, t_prompt, i_prompt] rows at the prompt layer ------
    # Single vectorized masked select (no dynamic sublane-offset stores).
    @pl.when(l == prompt_pos)
    def _():
        pm = pmask_ref[...]
        acc[...] = acc[...] * (1.0 - pm) + prompt_ref[...]

    bias = bias_ref[0]                                       # (B*S, B*S), layer-specific

    # ---------------- one ViLT encoder layer (pre-LN ViT block) ----------------
    x = acc[...]                                             # (B*S, H)
    xn = _ln(x, ln1g[0], ln1b[0], 1e-12)
    # fused QKV projection: one (B*S, H) x (H, 3H) matmul
    qkv = jnp.dot(xn, wqkv[0], preferred_element_type=jnp.float32) + bqkv[0]

    wo2 = wo[0]
    attn = None
    for h in range(num_heads):                               # static head loop
        qh = qkv[:, h * dh:(h + 1) * dh]                     # (B*S, dh)
        kh = qkv[:, H + h * dh:H + (h + 1) * dh]
        vh = qkv[:, 2 * H + h * dh:2 * H + (h + 1) * dh]
        # q @ k^T without an explicit transpose (rhs contracted on its dim 1);
        # batch-folded: cross-sample entries are killed by the block-diagonal bias.
        s = jax.lax.dot_general(qh, kh, (((1,), (1,)), ((), ())),
                                preferred_element_type=jnp.float32) * scale
        s = s + bias
        s = s - jnp.max(s, axis=-1, keepdims=True)
        p = jnp.exp(s)
        p = p * pl.reciprocal(jnp.sum(p, axis=-1, keepdims=True), approx=True)
        ctx = jnp.dot(p, vh, preferred_element_type=jnp.float32)        # (B*S, dh)
        # fold through the matching Wo slice instead of lane-concatenating heads
        contrib = jnp.dot(ctx, wo2[h * dh:(h + 1) * dh, :],
                          preferred_element_type=jnp.float32)
        attn = contrib if attn is None else attn + contrib
    attn = attn + bo[0]                                      # (B*S, H)

    h1 = x + attn                                            # residual 1
    h1n = _ln(h1, ln2g[0], ln2b[0], 1e-12)
    inter = _gelu(jnp.dot(h1n, w1[0], preferred_element_type=jnp.float32) + b1[0])
    acc[...] = (jnp.dot(inter, w2[0], preferred_element_type=jnp.float32)
                + b2[0] + h1)                                # residual 2

    # ---------------- fused head (only on the last layer) ----------------
    @pl.when(l == pl.num_programs(0) - 1)
    def _():
        y = acc[...]
        # pooler only consumes token 0 of each sample; LN is row-wise so LN just those.
        pooled_rows = jnp.concatenate(
            [y[b * seq:b * seq + 1, :] for b in range(batch)], axis=0)     # (B, H)
        pn = _ln(pooled_rows, flng[...], flnb[...], 1e-12)                 # vilt.layernorm
        pooled = jnp.tanh(jnp.dot(pn, pool_w[...],
                                  preferred_element_type=jnp.float32) + pool_b[...])
        cat = jnp.concatenate([pooled, lab_ref[...]], axis=-1)             # (B, 2H)
        hc = jnp.dot(cat, cls_w1[...], preferred_element_type=jnp.float32) + cls_b1[...]
        hc = _ln(hc, cls_lng[...], cls_lnb[...], 1e-5)
        hc = _gelu(hc)
        hc = jnp.dot(hc, cls_w2[...], preferred_element_type=jnp.float32) + cls_b2[...]
        # lane-dense (B, 128) logits; real logits live in lanes [0, CLS_NUM)
        out_ref[...] = jnp.dot(hc, lcls_t[...], preferred_element_type=jnp.float32)


# ------------------------------- Pallas wrappers -------------------------------
def patch_embed(patches_2d, w, b):
    R, Pd = patches_2d.shape
    hs = w.shape[1]
    return pl.pallas_call(
        _patch_embed_kernel,
        grid=(1,),
        out_shape=jax.ShapeDtypeStruct((R, hs), jnp.float32),
        in_specs=[pl.BlockSpec((R, Pd), lambda i: (0, 0)),
                  pl.BlockSpec((Pd, hs), lambda i: (0, 0)),
                  pl.BlockSpec((1, hs), lambda i: (0, 0))],
        out_specs=pl.BlockSpec((R, hs), lambda i: (0, 0)),
    )(patches_2d, w, b.reshape(1, hs))


def run_ragpt_core(params, x0, bias_all, prompt_full, pmask, lab, lcls_padT, *, batch):
    seq = SEQ_TOT
    H, I, L = HS, INTER, NUM_LAYERS
    BS = batch * seq
    layers = params['layers']

    st = lambda k: jnp.stack([lp[k] for lp in layers])                      # (L, a, b)
    stv = lambda k: jnp.stack([lp[k].reshape(1, -1) for lp in layers])      # (L, 1, n)
    wqkv = jnp.stack([jnp.concatenate([lp['wq'], lp['wk'], lp['wv']], axis=1)
                      for lp in layers])                                    # (L, H, 3H)
    bqkv = jnp.stack([jnp.concatenate([lp['bq'], lp['bk'], lp['bv']])[None, :]
                      for lp in layers])                                    # (L, 1, 3H)
    vec = lambda a: a.reshape(1, -1)

    const2d = lambda shape: pl.BlockSpec(shape, lambda l: (0, 0))
    per_layer = lambda shape: pl.BlockSpec((1,) + shape, lambda l: (l, 0, 0))

    kern = functools.partial(_ragpt_fused_kernel, batch=batch, seq=seq,
                             num_heads=NUM_HEADS, prompt_pos=PROMPT_POSITION)

    in_specs = [
        const2d((BS, H)),                                   # x0
        per_layer((BS, BS)),                                # bias_all (block-diag + mask)
        const2d((BS, H)),                                   # prompt_full
        const2d((BS, H)),                                   # pmask
        const2d((batch, H)),                                # lab (label_emb)
        per_layer((1, H)), per_layer((1, H)),               # ln_before g/b
        per_layer((H, 3 * H)), per_layer((1, 3 * H)),       # fused QKV
        per_layer((H, H)), per_layer((1, H)),               # attn output proj
        per_layer((1, H)), per_layer((1, H)),               # ln_after g/b
        per_layer((H, I)), per_layer((1, I)),               # intermediate
        per_layer((I, H)), per_layer((1, H)),               # output
        const2d((1, H)), const2d((1, H)),                   # final LN
        const2d((H, H)), const2d((1, H)),                   # pooler
        const2d((2 * H, 2 * H)), const2d((1, 2 * H)),       # classifier linear 1
        const2d((1, 2 * H)), const2d((1, 2 * H)),           # classifier LN
        const2d((2 * H, H)), const2d((1, H)),               # classifier linear 2
        const2d((H, CLS_PAD)),                              # label_cls^T (padded)
    ]

    # TODO(synk): at production HS (768) the (B*S, B*S) bias and resident weights need
    # vmem_limit_bytes / bf16 weights / K-tiled weight BlockSpecs to fit v7x's 64 MiB
    # per-TensorCore VMEM.
    out = pl.pallas_call(
        kern,
        grid=(L,),
        out_shape=jax.ShapeDtypeStruct((batch, CLS_PAD), jnp.float32),
        in_specs=in_specs,
        out_specs=pl.BlockSpec((batch, CLS_PAD), lambda l: (0, 0)),
        scratch_shapes=[pltpu.VMEM((BS, H), jnp.float32)],
        compiler_params=pltpu.CompilerParams(dimension_semantics=("arbitrary",)),
    )(x0, bias_all, prompt_full, pmask, lab,
      stv('ln1_g'), stv('ln1_b'),
      wqkv, bqkv,
      st('wo'), stv('bo'),
      stv('ln2_g'), stv('ln2_b'),
      st('w1'), stv('b1'), st('w2'), stv('b2'),
      vec(params['final_ln_g']), vec(params['final_ln_b']),
      params['pool_w'], vec(params['pool_b']),
      params['cls_w1'], vec(params['cls_b1']),
      vec(params['cls_ln_g']), vec(params['cls_ln_b']),
      params['cls_w2'], vec(params['cls_b2']),
      lcls_padT)
    return out[:, :CLS_NUM]


# ------------------------- plain-JAX glue (embeddings / MMG / CAP) -------------------------
def vilt_embed(params, input_ids, token_type_ids, attention_mask, pixel_values, pixel_mask):
    # TODO(synk): ViLT visual_embed pixel_mask-driven variable-resolution patch selection
    # and position-embedding interpolation are not reproduced; all patches are kept.
    del pixel_mask
    B = input_ids.shape[0]
    we = params['word_emb'][input_ids]
    pe = params['text_pos_emb'][None, :, :]
    te = params['type_emb'][token_type_ids]
    text = _ln(we + pe + te, params['text_ln_g'], params['text_ln_b'], 1e-12)
    text = text + params['type_emb'][0][None, None, :]

    # NCHW -> (B*Np, C*P*P) patch-major layout (per-patch flatten order C, ph, pw)
    _, C, Himg, Wimg = pixel_values.shape
    nph, npw = Himg // PATCH, Wimg // PATCH
    patches = pixel_values.reshape(B, C, nph, PATCH, npw, PATCH)
    patches = patches.transpose(0, 2, 4, 1, 3, 5).reshape(B * nph * npw, C * PATCH * PATCH)
    proj = patch_embed(patches, params['patch_w'], params['patch_b'])    # Pallas matmul
    proj = proj.reshape(B, nph * npw, HS)
    cls = jnp.broadcast_to(params['img_cls'][None, None, :], (B, 1, HS))
    img = jnp.concatenate([cls, proj], axis=1) + params['img_pos_emb'][None, :, :]
    img = img + params['type_emb'][1][None, None, :]

    emb = jnp.concatenate([text, img], axis=1)
    mask = jnp.concatenate(
        [attention_mask.astype(jnp.float32),
         jnp.ones((B, img.shape[1]), jnp.float32)], axis=1)
    return emb, mask


def mmg_apply(p, r):
    # TODO(synk): MMG architecture not provided in the reference; stand-in =
    # mean over retrieved samples -> per-token Linear -> LayerNorm.
    x = jnp.mean(r, axis=1)                                      # (B, n, d)
    x = jnp.einsum('bnd,de->bne', x, p['w']) + p['b']
    return _ln(x, p['ln_g'], p['ln_b'], 1e-5)


def cap_apply(p, r_i, r_t, T, V):
    # TODO(synk): CAP (dynamic prompt) architecture not provided; stand-in =
    # single-head cross-attention of mean retrieved features over the other modality.
    scale = 1.0 / (HS ** 0.5)
    q_t = jnp.einsum('bnd,de->bne', jnp.mean(r_t, axis=1), p['wq_t'])
    k_t = jnp.einsum('bnd,de->bne', V, p['wk_t'])
    v_t = jnp.einsum('bnd,de->bne', V, p['wv_t'])
    a_t = jax.nn.softmax(jnp.einsum('bqd,bkd->bqk', q_t, k_t) * scale, axis=-1)
    t_prompt = jnp.einsum('bqk,bkd->bqd', a_t, v_t)

    q_i = jnp.einsum('bnd,de->bne', jnp.mean(r_i, axis=1), p['wq_i'])
    k_i = jnp.einsum('bnd,de->bne', T, p['wk_i'])
    v_i = jnp.einsum('bnd,de->bne', T, p['wv_i'])
    a_i = jax.nn.softmax(jnp.einsum('bqd,bkd->bqk', q_i, k_i) * scale, axis=-1)
    i_prompt = jnp.einsum('bqk,bkd->bqd', a_i, v_i)
    return t_prompt, i_prompt


# ------------------------------- RAGPT forward -------------------------------
def ragpt_forward(params, input_ids, pixel_values, pixel_mask, token_type_ids,
                  attention_mask, r_t_list, r_i_list, r_l_list, missing_mask):
    B = input_ids.shape[0]
    embedding, mask = vilt_embed(params, input_ids, token_type_ids, attention_mask,
                                 pixel_values, pixel_mask)
    text_emb = embedding[:, :MAX_TEXT_LEN, :]
    image_emb = embedding[:, MAX_TEXT_LEN:, :]

    # missing_type == 'Text'
    recovered_t = mmg_apply(params['mmg'], r_t_list)
    m = missing_mask.astype(jnp.float32)[:, None, None]
    text_emb = text_emb * m + recovered_t * (1.0 - m)

    t_prompt, i_prompt = cap_apply(params['cap'], r_i_list, r_t_list, text_emb, image_emb)
    t_prompt = jnp.mean(t_prompt, axis=1)                        # (B, HS)
    i_prompt = jnp.mean(i_prompt, axis=1)                        # (B, HS)

    # task_id == 'hatememes'
    label_emb = jnp.mean(params['label_enhanced'][r_l_list], axis=1)   # (B, HS)

    # Fixed 8-sublane-aligned layout for all layers:
    #   rows [0, 3)  : prompt slots (zeroed + masked until PROMPT_POSITION)
    #   rows [3, 16) : text tokens (8) followed by image tokens (5)
    # Attention is permutation-equivariant given the mask and the encoder has no
    # positional dependence, so pre-padding the prompt slots is exactly equivalent
    # to the reference's mid-stack concatenation.
    x0 = jnp.concatenate(
        [jnp.zeros((B, NUM_PROMPT_TOK, HS), jnp.float32), text_emb, image_emb], axis=1)
    x0 = x0.reshape(B * SEQ_TOT, HS)

    # Per-layer attention bias, batch-folded + block-diagonal:
    #   bias[r, c] = -1e4 if r, c belong to different samples
    #              = (1 - key_mask[c]) * -1e4 otherwise  (prompt cols masked pre-prompt)
    mask_pre = jnp.concatenate(
        [jnp.zeros((B, NUM_PROMPT_TOK), jnp.float32), mask], axis=1)
    mask_post = jnp.concatenate(
        [jnp.ones((B, NUM_PROMPT_TOK), jnp.float32), mask], axis=1)
    key_bias_pre = ((1.0 - mask_pre) * MASK_BIAS).reshape(B * SEQ_TOT)
    key_bias_post = ((1.0 - mask_post) * MASK_BIAS).reshape(B * SEQ_TOT)
    sample_ids = jnp.repeat(jnp.arange(B), SEQ_TOT)
    cross = sample_ids[:, None] != sample_ids[None, :]           # (B*S, B*S)
    bias_pre = jnp.where(cross, MASK_BIAS, key_bias_pre[None, :])
    bias_post = jnp.where(cross, MASK_BIAS, key_bias_post[None, :])
    bias_all = jnp.stack(
        [bias_pre if i < PROMPT_POSITION else bias_post for i in range(NUM_LAYERS)])

    # Prompt-row slab + row mask (one vectorized select inside the kernel).
    prompts3 = jnp.stack([label_emb, t_prompt, i_prompt], axis=1)          # (B, 3, HS)
    prompt_full = jnp.zeros((B, SEQ_TOT, HS), jnp.float32)
    prompt_full = prompt_full.at[:, :NUM_PROMPT_TOK, :].set(prompts3)
    prompt_full = prompt_full.reshape(B * SEQ_TOT, HS)
    pmask = jnp.zeros((B, SEQ_TOT, 1), jnp.float32).at[:, :NUM_PROMPT_TOK, :].set(1.0)
    pmask = jnp.broadcast_to(pmask, (B, SEQ_TOT, HS)).reshape(B * SEQ_TOT, HS)

    lcls_padT = jnp.zeros((HS, CLS_PAD), jnp.float32).at[:, :CLS_NUM].set(
        params['label_enhanced'].T)

    return run_ragpt_core(params, x0, bias_all, prompt_full, pmask, label_emb,
                          lcls_padT, batch=B)


# ------------------------------- parameter init -------------------------------
def init_params(key):
    keys = iter(jax.random.split(key, 128))
    nrm = lambda shape, std=0.02: jax.random.normal(next(keys), shape, jnp.float32) * std
    ones = lambda n: jnp.ones((n,), jnp.float32)
    zeros = lambda n: jnp.zeros((n,), jnp.float32)

    p = {
        'word_emb': nrm((VOCAB, HS)),
        'text_pos_emb': nrm((MAX_TEXT_LEN, HS)),
        'type_emb': nrm((TYPE_VOCAB, HS)),
        'text_ln_g': ones(HS), 'text_ln_b': zeros(HS),
        'patch_w': nrm((IN_CH * PATCH * PATCH, HS)), 'patch_b': zeros(HS),
        'img_cls': nrm((HS,)),
        'img_pos_emb': nrm((MAX_IMAGE_LEN, HS)),
        'final_ln_g': ones(HS), 'final_ln_b': zeros(HS),
        'pool_w': nrm((HS, HS)), 'pool_b': zeros(HS),
        'label_enhanced': jax.random.normal(next(keys), (CLS_NUM, HS), jnp.float32),
        'cls_w1': nrm((2 * HS, 2 * HS)), 'cls_b1': zeros(2 * HS),
        'cls_ln_g': ones(2 * HS), 'cls_ln_b': zeros(2 * HS),
        'cls_w2': nrm((2 * HS, HS)), 'cls_b2': zeros(HS),
        'mmg': {'w': nrm((HS, HS)), 'b': zeros(HS), 'ln_g': ones(HS), 'ln_b': zeros(HS)},
        'cap': {'wq_t': nrm((HS, HS)), 'wk_t': nrm((HS, HS)), 'wv_t': nrm((HS, HS)),
                'wq_i': nrm((HS, HS)), 'wk_i': nrm((HS, HS)), 'wv_i': nrm((HS, HS))},
    }
    layers = []
    for _ in range(NUM_LAYERS):
        layers.append({
            'ln1_g': ones(HS), 'ln1_b': zeros(HS),
            'wq': nrm((HS, HS)), 'bq': zeros(HS),
            'wk': nrm((HS, HS)), 'bk': zeros(HS),
            'wv': nrm((HS, HS)), 'bv': zeros(HS),
            'wo': nrm((HS, HS)), 'bo': zeros(HS),
            'ln2_g': ones(HS), 'ln2_b': zeros(HS),
            'w1': nrm((HS, INTER)), 'b1': zeros(INTER),
            'w2': nrm((INTER, HS)), 'b2': zeros(HS),
        })
    p['layers'] = layers
    return p


# ------------------------------------ main ------------------------------------
if __name__ == "__main__":
    key = jax.random.PRNGKey(0)
    k_par, k_ids, k_pix, k_rt, k_ri, k_rl = jax.random.split(key, 6)

    params = init_params(k_par)

    B = 2
    input_ids = jax.random.randint(k_ids, (B, MAX_TEXT_LEN), 0, VOCAB, dtype=jnp.int32)
    token_type_ids = jnp.zeros((B, MAX_TEXT_LEN), jnp.int32)
    attention_mask = jnp.ones((B, MAX_TEXT_LEN), jnp.float32).at[1, 6:].set(0.0)
    pixel_values = jax.random.normal(k_pix, (B, IN_CH, IMG_SIZE, IMG_SIZE), jnp.float32)
    pixel_mask = jnp.ones((B, IMG_SIZE, IMG_SIZE), jnp.int32)
    r_t_list = jax.random.normal(k_rt, (B, K_RETRIEVED, MAX_TEXT_LEN, HS), jnp.float32)
    r_i_list = jax.random.normal(k_ri, (B, K_RETRIEVED, MAX_IMAGE_LEN, HS), jnp.float32)
    r_l_list = jax.random.randint(k_rl, (B, K_RETRIEVED), 0, CLS_NUM, dtype=jnp.int32)
    missing_mask = jnp.array([True, False])   # True = text present, False = text missing

    logits = ragpt_forward(params, input_ids, pixel_values, pixel_mask, token_type_ids,
                           attention_mask, r_t_list, r_i_list, r_l_list, missing_mask)
    logits = jax.block_until_ready(logits)
    assert logits.shape == (B, CLS_NUM)
    assert bool(jnp.all(jnp.isfinite(logits)))
    print("KERNEL_OK")
</pallas_src>

<mosaic_0001>
module attributes {stable_mosaic.version = 11 : i64} {
  func.func @_patch_embed_kernel(%arg0: i32, %arg1: memref<8x768xf32, #tpu.memory_space<vmem>>, %arg2: memref<768x32xf32, #tpu.memory_space<vmem>>, %arg3: memref<1x32xf32, #tpu.memory_space<vmem>>, %arg4: memref<8x32xf32, #tpu.memory_space<vmem>>) attributes {dimension_semantics = [#tpu.dimension_semantics<arbitrary>], iteration_bounds = array<i64: 1>, scalar_prefetch = 0 : i64, scratch_operands = 0 : i64, tpu.core_type = #tpu.core_type<tc>, window_params = [{pipeline_mode = #tpu.pipeline_mode<synchronous>, transform_indices = @transform_0, window_bounds = array<i64: 8, 768>}, {pipeline_mode = #tpu.pipeline_mode<synchronous>, transform_indices = @transform_1, window_bounds = array<i64: 768, 32>}, {pipeline_mode = #tpu.pipeline_mode<synchronous>, transform_indices = @transform_2, window_bounds = array<i64: 1, 32>}, {pipeline_mode = #tpu.pipeline_mode<synchronous>, transform_indices = @transform_3, window_bounds = array<i64: 8, 32>}]} {
    %c0 = arith.constant 0 : index
    %c0_0 = arith.constant 0 : index
    %0 = vector.load %arg1[%c0, %c0_0] : memref<8x768xf32, #tpu.memory_space<vmem>>, vector<8x768xf32>
    %c0_1 = arith.constant 0 : index
    %c0_2 = arith.constant 0 : index
    %1 = vector.load %arg2[%c0_1, %c0_2] : memref<768x32xf32, #tpu.memory_space<vmem>>, vector<768x32xf32>
    %cst = arith.constant dense<0.000000e+00> : vector<8x32xf32>
    %2 = tpu.matmul %0, %1, %cst {dimension_numbers = #tpu.dot_dimension_numbers<[1], [0], [0], [1], [0, 0, 1, 1], [], []>} : vector<8x768xf32>, vector<768x32xf32>, vector<8x32xf32> -> vector<8x32xf32>
    %c0_3 = arith.constant 0 : index
    %c0_4 = arith.constant 0 : index
    %3 = vector.load %arg3[%c0_3, %c0_4] : memref<1x32xf32, #tpu.memory_space<vmem>>, vector<1x32xf32>
    %4 = vector.broadcast %3 : vector<1x32xf32> to vector<8x32xf32>
    %5 = arith.addf %2, %4 : vector<8x32xf32>
    %c0_5 = arith.constant 0 : index
    %c0_6 = arith.constant 0 : index
    %6 = vector.load %arg4[%c0_5, %c0_6] : memref<8x32xf32, #tpu.memory_space<vmem>>, vector<8x32xf32>
    tpu.vector_store %arg4[%c0_5, %c0_6], %5 {strides = array<i32>} : memref<8x32xf32, #tpu.memory_space<vmem>>, vector<8x32xf32>,
    return
  }
  func.func @transform_0(%arg0: i32) -> (i32, i32) {
    %c0_i32 = arith.constant 0 : i32
    %c0_i32_0 = arith.constant 0 : i32
    %c0_i32_1 = arith.constant 0 : i32
    return %c0_i32, %c0_i32_0 : i32, i32
  }
  func.func @transform_1(%arg0: i32) -> (i32, i32) {
    %c0_i32 = arith.constant 0 : i32
    %c0_i32_0 = arith.constant 0 : i32
    %c0_i32_1 = arith.constant 0 : i32
    return %c0_i32, %c0_i32_0 : i32, i32
  }
  func.func @transform_2(%arg0: i32) -> (i32, i32) {
    %c0_i32 = arith.constant 0 : i32
    %c0_i32_0 = arith.constant 0 : i32
    %c0_i32_1 = arith.constant 0 : i32
    return %c0_i32, %c0_i32_0 : i32, i32
  }
  func.func @transform_3(%arg0: i32) -> (i32, i32) {
    %c0_i32 = arith.constant 0 : i32
    %c0_i32_0 = arith.constant 0 : i32
    %c0_i32_1 = arith.constant 0 : i32
    return %c0_i32, %c0_i32_0 : i32, i32
  }
}

</mosaic_0001>

<llo_original>
// kernel: tpu_custom_call.1
$region0: #{tpu_custom_call.1}
  #allocation0 [shape = 'u32[]', space=smem, size = 0x4, offset = 0x4, fixed_abs, tag = 'smem constant byte address 0x4 - core index']
  #allocation1 [shape = 'u32[72,128]{1,0:T(1,128)}', space=vmem, size = 0x9000, scoped, tag = 'internal scratch']
  %s0 = inlined_call_operand.vmem [shape: f32[8,768], index: 0, kind: input, shape index: {}]
  %s1 = inlined_call_operand.vmem [shape: f32[768,32], index: 1, kind: input, shape index: {}]
  %s2 = inlined_call_operand.vmem [shape: f32[1,32], index: 2, kind: input, shape index: {}]
  %s3 = inlined_call_operand.hbm [shape: f32[8,32], index: 3, kind: output, shape index: {}]
  %s4 = sld [smem:[#allocation0]]
  $region22: #{tpu_custom_call.1} parent=0
    _
  %s6 = ssub.s32 1, %s4
  %s7 = scalar_select 0, %s6, %s4
  $region1: #{tpu_custom_call.1} parent=0
    #allocation2 [shape = 'u8[4096]{0}', space=vmem, size = 0x1000, scoped, tag = 'output window, operand 0, single buffered']
    #allocation3 [shape = 's32[1]{0}', space=sflag, size = 0x4, scoped, tag = 'scoped memory for tpu_custom_call.1']
    %8 = vsyncpa [#allocation3], 0
    // Predicated region
    $region2: #{tpu_custom_call.1} parent=1 // pred_check
      _
    $region3: #{tpu_custom_call.1} parent=1 // pred_check_branch
      %10 = sbr.rel (0) target = $region5
    $region4: #{tpu_custom_call.1} parent=1 // pred_region
      _
    $region5: #{tpu_custom_call.1} parent=1 // pred_fallthru
      _
    // Predicated region
    $region6: #{tpu_custom_call.1} parent=1 // pred_check
      _
    $region7: #{tpu_custom_call.1} parent=1 // pred_check_branch
      %12 = sbr.rel (0) target = $region9
    $region8: #{tpu_custom_call.1} parent=1 // pred_region
      _
    $region9: #{tpu_custom_call.1} parent=1 // pred_fallthru
      _
    // Predicated region
    $region10: #{tpu_custom_call.1} parent=1 // pred_check
      _
    $region11: #{tpu_custom_call.1} parent=1 // pred_check_branch
      %14 = sbr.rel (0) target = $region13
    $region12: #{tpu_custom_call.1} parent=1 // pred_region
      _
    $region13: #{tpu_custom_call.1} parent=1 // pred_fallthru
      _
    %v15 = vld [vmem:[%s0] sm:$0xff]
    %v16 = vld [vmem:[%s0 + $0x8] sm:$0xff]
    %v17 = vld [vmem:[%s0 + $0x10] sm:$0xff]
    %v18 = vld [vmem:[%s0 + $0x18] sm:$0xff]
    %v19 = vld [vmem:[%s0 + $0x20] sm:$0xff]
    %v20 = vld [vmem:[%s0 + $0x28] sm:$0xff]
    %v21 = vld [vmem:[%s1] sm:$0xff]
    %v22 = vld [vmem:[%s1 + $0x8] sm:$0xff]
    %v23 = vld [vmem:[%s1 + $0x10] sm:$0xff]
    %v24 = vld [vmem:[%s1 + $0x18] sm:$0xff]
    %v25 = vld [vmem:[%s1 + $0x20] sm:$0xff]
    %v26 = vld [vmem:[%s1 + $0x28] sm:$0xff]
    %v27 = vld [vmem:[%s1 + $0x30] sm:$0xff]
    %v28 = vld [vmem:[%s1 + $0x38] sm:$0xff]
    %v29 = vld [vmem:[%s1 + $0x40] sm:$0xff]
    %v30 = vld [vmem:[%s1 + $0x48] sm:$0xff]
    %v31 = vld [vmem:[%s1 + $0x50] sm:$0xff]
    %v32 = vld [vmem:[%s1 + $0x58] sm:$0xff]
    %v33 = vld [vmem:[%s1 + $0x60] sm:$0xff]
    %v34 = vld [vmem:[%s1 + $0x68] sm:$0xff]
    %v35 = vld [vmem:[%s1 + $0x70] sm:$0xff]
    %v36 = vld [vmem:[%s1 + $0x78] sm:$0xff]
    %v37 = vld [vmem:[%s1 + $0x80] sm:$0xff]
    %v38 = vld [vmem:[%s1 + $0x88] sm:$0xff]
    %v39 = vld [vmem:[%s1 + $0x90] sm:$0xff]
    %v40 = vld [vmem:[%s1 + $0x98] sm:$0xff]
    %v41 = vld [vmem:[%s1 + $0xa0] sm:$0xff]
    %v42 = vld [vmem:[%s1 + $0xa8] sm:$0xff]
    %v43 = vld [vmem:[%s1 + $0xb0] sm:$0xff]
    %v44 = vld [vmem:[%s1 + $0xb8] sm:$0xff]
    %v45 = vld [vmem:[%s1 + $0xc0] sm:$0xff]
    %v46 = vld [vmem:[%s1 + $0xc8] sm:$0xff]
    %v47 = vld [vmem:[%s1 + $0xd0] sm:$0xff]
    %v48 = vld [vmem:[%s1 + $0xd8] sm:$0xff]
    %v49 = vld [vmem:[%s1 + $0xe0] sm:$0xff]
    %v50 = vld [vmem:[%s1 + $0xe8] sm:$0xff]
    %v51 = vld [vmem:[%s1 + $0xf0] sm:$0xff]
    %v52 = vld [vmem:[%s1 + $0xf8] sm:$0xff]
    %v53 = vld [vmem:[%s1 + $0x100] sm:$0xff]
    %v54 = vld [vmem:[%s1 + $0x108] sm:$0xff]
    %v55 = vld [vmem:[%s1 + $0x110] sm:$0xff]
    %v56 = vld [vmem:[%s1 + $0x118] sm:$0xff]
    %v57 = vld [vmem:[%s1 + $0x120] sm:$0xff]
    %v58 = vld [vmem:[%s1 + $0x128] sm:$0xff]
    %v59 = vld [vmem:[%s1 + $0x130] sm:$0xff]
    %v60 = vld [vmem:[%s1 + $0x138] sm:$0xff]
    %v61 = vld [vmem:[%s1 + $0x140] sm:$0xff]
    %v62 = vld [vmem:[%s1 + $0x148] sm:$0xff]
    %v63 = vld [vmem:[%s1 + $0x150] sm:$0xff]
    %v64 = vld [vmem:[%s1 + $0x158] sm:$0xff]
    %v65 = vld [vmem:[%s1 + $0x160] sm:$0xff]
    %v66 = vld [vmem:[%s1 + $0x168] sm:$0xff]
    %v67 = vld [vmem:[%s1 + $0x170] sm:$0xff]
    %v68 = vld [vmem:[%s1 + $0x178] sm:$0xff]
    %v69 = vld [vmem:[%s1 + $0x180] sm:$0xff]
    %v70 = vld [vmem:[%s1 + $0x188] sm:$0xff]
    %v71 = vld [vmem:[%s1 + $0x190] sm:$0xff]
    %v72 = vld [vmem:[%s1 + $0x198] sm:$0xff]
    %v73 = vld [vmem:[%s1 + $0x1a0] sm:$0xff]
    %v74 = vld [vmem:[%s1 + $0x1a8] sm:$0xff]
    %v75 = vld [vmem:[%s1 + $0x1b0] sm:$0xff]
    %v76 = vld [vmem:[%s1 + $0x1b8] sm:$0xff]
    %v77 = vld [vmem:[%s1 + $0x1c0] sm:$0xff]
    %v78 = vld [vmem:[%s1 + $0x1c8] sm:$0xff]
    %v79 = vld [vmem:[%s1 + $0x1d0] sm:$0xff]
    %v80 = vld [vmem:[%s1 + $0x1d8] sm:$0xff]
    %v81 = vld [vmem:[%s1 + $0x1e0] sm:$0xff]
    %v82 = vld [vmem:[%s1 + $0x1e8] sm:$0xff]
    %v83 = vld [vmem:[%s1 + $0x1f0] sm:$0xff]
    %v84 = vld [vmem:[%s1 + $0x1f8] sm:$0xff]
    %v85 = vld [vmem:[%s1 + $0x200] sm:$0xff]
    %v86 = vld [vmem:[%s1 + $0x208] sm:$0xff]
    %v87 = vld [vmem:[%s1 + $0x210] sm:$0xff]
    %v88 = vld [vmem:[%s1 + $0x218] sm:$0xff]
    %v89 = vld [vmem:[%s1 + $0x220] sm:$0xff]
    %v90 = vld [vmem:[%s1 + $0x228] sm:$0xff]
    %v91 = vld [vmem:[%s1 + $0x230] sm:$0xff]
    %v92 = vld [vmem:[%s1 + $0x238] sm:$0xff]
    %v93 = vld [vmem:[%s1 + $0x240] sm:$0xff]
    %v94 = vld [vmem:[%s1 + $0x248] sm:$0xff]
    %v95 = vld [vmem:[%s1 + $0x250] sm:$0xff]
    %v96 = vld [vmem:[%s1 + $0x258] sm:$0xff]
    %v97 = vld [vmem:[%s1 + $0x260] sm:$0xff]
    %v98 = vld [vmem:[%s1 + $0x268] sm:$0xff]
    %v99 = vld [vmem:[%s1 + $0x270] sm:$0xff]
    %v100 = vld [vmem:[%s1 + $0x278] sm:$0xff]
    %v101 = vld [vmem:[%s1 + $0x280] sm:$0xff]
    %v102 = vld [vmem:[%s1 + $0x288] sm:$0xff]
    %v103 = vld [vmem:[%s1 + $0x290] sm:$0xff]
    %v104 = vld [vmem:[%s1 + $0x298] sm:$0xff]
    %v105 = vld [vmem:[%s1 + $0x2a0] sm:$0xff]
    %v106 = vld [vmem:[%s1 + $0x2a8] sm:$0xff]
    %v107 = vld [vmem:[%s1 + $0x2b0] sm:$0xff]
    %v108 = vld [vmem:[%s1 + $0x2b8] sm:$0xff]
    %v109 = vld [vmem:[%s1 + $0x2c0] sm:$0xff]
    %v110 = vld [vmem:[%s1 + $0x2c8] sm:$0xff]
    %v111 = vld [vmem:[%s1 + $0x2d0] sm:$0xff]
    %v112 = vld [vmem:[%s1 + $0x2d8] sm:$0xff]
    %v113 = vld [vmem:[%s1 + $0x2e0] sm:$0xff]
    %v114 = vld [vmem:[%s1 + $0x2e8] sm:$0xff]
    %v115 = vld [vmem:[%s1 + $0x2f0] sm:$0xff]
    %v116 = vld [vmem:[%s1 + $0x2f8] sm:$0xff]
    %v117 = vld [vmem:[%s2] sm:$0x1]
    %v119 = vperm.slane %v117, 0
    %121 = vmatpush.msra.mxu0 %v36
    %122 = vmatpush.msra.mxu0 %v35
    %123 = vmatpush.msra.mxu0 %v34
    %124 = vmatpush.msra.mxu0 %v33
    %125 = vmatpush.msra.mxu0 %v32
    %126 = vmatpush.msra.mxu0 %v31
    %127 = vmatpush.msra.mxu0 %v30
    %128 = vmatpush.msra.mxu0 %v29
    %129 = vmatpush.msra.mxu0 %v28
    %130 = vmatpush.msra.mxu0 %v27
    %131 = vmatpush.msra.mxu0 %v26
    %132 = vmatpush.msra.mxu0 %v25
    %133 = vmatpush.msra.mxu0 %v24
    %134 = vmatpush.msra.mxu0 %v23
    %135 = vmatpush.msra.mxu0 %v22
    %136 = vmatpush.msra.mxu0 %v21
    %137 = vmatmul.f32.gmra.mxu0 %v15
    %v138 = vpop.f32.mrf.mxu0
    %v139 = vadd.f32 %v119, %v138
    %140 = vdwg.mxu0
    %141 = vmatpush.msra.mxu0 %v52
    %142 = vmatpush.msra.mxu0 %v51
    %143 = vmatpush.msra.mxu0 %v50
    %144 = vmatpush.msra.mxu0 %v49
    %145 = vmatpush.msra.mxu0 %v48
    %146 = vmatpush.msra.mxu0 %v47
    %147 = vmatpush.msra.mxu0 %v46
    %148 = vmatpush.msra.mxu0 %v45
    %149 = vmatpush.msra.mxu0 %v44
    %150 = vmatpush.msra.mxu0 %v43
    %151 = vmatpush.msra.mxu0 %v42
    %152 = vmatpush.msra.mxu0 %v41
    %153 = vmatpush.msra.mxu0 %v40
    %154 = vmatpush.msra.mxu0 %v39
    %155 = vmatpush.msra.mxu0 %v38
    %156 = vmatpush.msra.mxu0 %v37
    %157 = vmatmul.f32.gmra.mxu0 %v16
    %v158 = vpop.f32.mrf.mxu0
    %v159 = vadd.f32 %v139, %v158
    %160 = vdwg.mxu0
    %161 = vmatpush.msra.mxu0 %v68
    %162 = vmatpush.msra.mxu0 %v67
    %163 = vmatpush.msra.mxu0 %v66
    %164 = vmatpush.msra.mxu0 %v65
    %165 = vmatpush.msra.mxu0 %v64
    %166 = vmatpush.msra.mxu0 %v63
    %167 = vmatpush.msra.mxu0 %v62
    %168 = vmatpush.msra.mxu0 %v61
    %169 = vmatpush.msra.mxu0 %v60
    %170 = vmatpush.msra.mxu0 %v59
    %171 = vmatpush.msra.mxu0 %v58
    %172 = vmatpush.msra.mxu0 %v57
    %173 = vmatpush.msra.mxu0 %v56
    %174 = vmatpush.msra.mxu0 %v55
    %175 = vmatpush.msra.mxu0 %v54
    %176 = vmatpush.msra.mxu0 %v53
    %177 = vmatmul.f32.gmra.mxu0 %v17
    %v178 = vpop.f32.mrf.mxu0
    %v179 = vadd.f32 %v159, %v178
    %180 = vdwg.mxu0
    %181 = vmatpush.msra.mxu0 %v84
    %182 = vmatpush.msra.mxu0 %v83
    %183 = vmatpush.msra.mxu0 %v82
    %184 = vmatpush.msra.mxu0 %v81
    %185 = vmatpush.msra.mxu0 %v80
    %186 = vmatpush.msra.mxu0 %v79
    %187 = vmatpush.msra.mxu0 %v78
    %188 = vmatpush.msra.mxu0 %v77
    %189 = vmatpush.msra.mxu0 %v76
    %190 = vmatpush.msra.mxu0 %v75
    %191 = vmatpush.msra.mxu0 %v74
    %192 = vmatpush.msra.mxu0 %v73
    %193 = vmatpush.msra.mxu0 %v72
    %194 = vmatpush.msra.mxu0 %v71
    %195 = vmatpush.msra.mxu0 %v70
    %196 = vmatpush.msra.mxu0 %v69
    %197 = vmatmul.f32.gmra.mxu0 %v18
    %v198 = vpop.f32.mrf.mxu0
    %v199 = vadd.f32 %v179, %v198
    %200 = vdwg.mxu0
    %201 = vmatpush.msra.mxu0 %v100
    %202 = vmatpush.msra.mxu0 %v99
    %203 = vmatpush.msra.mxu0 %v98
    %204 = vmatpush.msra.mxu0 %v97
    %205 = vmatpush.msra.mxu0 %v96
    %206 = vmatpush.msra.mxu0 %v95
    %207 = vmatpush.msra.mxu0 %v94
    %208 = vmatpush.msra.mxu0 %v93
    %209 = vmatpush.msra.mxu0 %v92
    %210 = vmatpush.msra.mxu0 %v91
    %211 = vmatpush.msra.mxu0 %v90
    %212 = vmatpush.msra.mxu0 %v89
    %213 = vmatpush.msra.mxu0 %v88
    %214 = vmatpush.msra.mxu0 %v87
    %215 = vmatpush.msra.mxu0 %v86
    %216 = vmatpush.msra.mxu0 %v85
    %217 = vmatmul.f32.gmra.mxu0 %v19
    %v218 = vpop.f32.mrf.mxu0
    %v219 = vadd.f32 %v199, %v218
    %220 = vdwg.mxu0
    %221 = vmatpush.msra.mxu0 %v116
    %222 = vmatpush.msra.mxu0 %v115
    %223 = vmatpush.msra.mxu0 %v114
    %224 = vmatpush.msra.mxu0 %v113
    %225 = vmatpush.msra.mxu0 %v112
    %226 = vmatpush.msra.mxu0 %v111
    %227 = vmatpush.msra.mxu0 %v110
    %228 = vmatpush.msra.mxu0 %v109
    %229 = vmatpush.msra.mxu0 %v108
    %230 = vmatpush.msra.mxu0 %v107
    %231 = vmatpush.msra.mxu0 %v106
    %232 = vmatpush.msra.mxu0 %v105
    %233 = vmatpush.msra.mxu0 %v104
    %234 = vmatpush.msra.mxu0 %v103
    %235 = vmatpush.msra.mxu0 %v102
    %236 = vmatpush.msra.mxu0 %v101
    %237 = vmatmul.f32.gmra.mxu0 %v20
    %v238 = vpop.f32.mrf.mxu0
    %v239 = vadd.f32 %v219, %v238
    %240 = vdwg.mxu0
    %vm241 = vcmask 261120
    %242 = vst.msk [vmem:[#allocation2] sm:$0xff] %vm241, %v239
    // Predicated region
    $region14: #{tpu_custom_call.1} parent=1 // pred_check
      _
    $region15: #{tpu_custom_call.1} parent=1 // pred_check_branch
      %244 = sbr.rel (0) target = $region17
    $region16: #{tpu_custom_call.1} parent=1 // pred_region
      %246 = vsyncadd [#allocation3], 0
      %s248 = sshll.u32 [#allocation2], 4
      %s249 = int_to_ptr.vmem [resolvable:$true] %s248
      %s250 = sshll.u32 %s3, 4
      %s251 = int_to_ptr.hbm [resolvable:$true] %s250
      %253 = dma.vmem_to_hbm [thread:$0]  %s249, 128, %s251, [#allocation3]
    $region17: #{tpu_custom_call.1} parent=1 // pred_fallthru
      _
    // Predicated region
    $region18: #{tpu_custom_call.1} parent=1 // pred_check
      _
    $region19: #{tpu_custom_call.1} parent=1 // pred_check_branch
      %255 = sbr.rel (0) target = $region21
    $region20: #{tpu_custom_call.1} parent=1 // pred_region
      %257 = dma.done [#allocation3], 128
    $region21: #{tpu_custom_call.1} parent=1 // pred_fallthru
      _
    %258 = vsyncpa [#allocation3], 1

</llo_original>
